<compile_context>
chip_gen: v5e
topology: v5e:2x2
jax: 0.10.0
libtpu: 0.0.40
codegen_flags: <defaults>
</compile_context>

<pallas_src>
import functools
import math

import numpy as np
import jax
import jax.numpy as jnp
from jax import lax
from jax.experimental import pallas as pl
from jax.experimental.pallas import tpu as pltpu


def make_plr_weights(seq_length: int) -> np.ndarray:
    """Static (K, S) matrix reproducing the torch cumsum-difference segment
    means, including the negative-index behaviour at start == 0 and the
    (end - start + 1) divisor."""
    max_window = seq_length // 2
    rows = []
    window, start = 1, 0
    while start < seq_length:
        end = min(start + window, seq_length)
        prefix_end = np.zeros(seq_length, np.float64)
        prefix_end[:end] = 1.0                      # cumsum[:, end-1]
        idx = (start - 1) % seq_length              # cumsum[:, start-1] (wraps to -1 at start==0)
        prefix_start = np.zeros(seq_length, np.float64)
        prefix_start[:idx + 1] = 1.0
        rows.append((prefix_end - prefix_start) / float(end - start + 1))
        start += window
        window *= 2
        if window > max_window:
            window = max_window
    return np.stack(rows).astype(np.float32)


def _atplr_kernel(w_ref, s1_ref, s2_ref, out_ref, acc_ref, *, unroll):
    g = pl.program_id(1)

    # (K, F) f32 scratch is the accumulator across the reduction (g) axis.
    @pl.when(g == 0)
    def _():
        acc_ref[...] = jnp.zeros_like(acc_ref)

    w = w_ref[...]                                   # (K, S) f32, tiny
    tb = s1_ref.shape[0]

    def body(b, acc):
        # diff on VPU, single small MXU matmul per batch element
        d = s1_ref[b].astype(jnp.float32) - s2_ref[b].astype(jnp.float32)   # (S, F)
        e = jnp.dot(w, d, preferred_element_type=jnp.float32)               # (K, F)
        return acc + e * e

    part = lax.fori_loop(0, tb, body,
                         jnp.zeros(acc_ref.shape, jnp.float32),
                         unroll=unroll)
    acc_ref[...] += part

    # single store of the per-core partial at the end of the reduction axis
    @pl.when(g == pl.num_programs(1) - 1)
    def _():
        out_ref[...] = acc_ref[...][None, :, :]


def _round_up(x: int, m: int) -> int:
    return ((x + m - 1) // m) * m


def _cdiv(a: int, b: int) -> int:
    return -(-a // b)


def _vmem_limit_bytes() -> int:
    """Per-generation scoped-VMEM limit with headroom for Mosaic internals."""
    phys = None
    try:
        phys = int(pltpu.get_tpu_info().vmem_capacity_bytes)
    except Exception:
        phys = None
    if not phys:
        try:
            kind = jax.devices()[0].device_kind.lower()
        except Exception:
            kind = ""
        is_v7 = ("v7" in kind) or ("tpu7" in kind) or ("7x" in kind)
        phys = (64 if is_v7 else 128) * 1024 * 1024
    limit = min(phys - 24 * 1024 * 1024, 96 * 1024 * 1024)
    return max(limit, 16 * 1024 * 1024)


def _choose_tiling(batch: int, seq: int, feat: int, itemsize: int,
                   nc: int, budget_bytes: int):
    """Pick (tb, g) so 2 inputs x 2 pipeline buffers of *padded* (tb,S,F)
    blocks fit the budget, while minimizing batch zero-padding."""
    sublane = {4: 8, 2: 16, 1: 32}.get(itemsize, 8)
    per_b = _round_up(seq, sublane) * _round_up(feat, 128) * itemsize
    tb_cap = max(1, budget_bytes // (4 * per_b))
    bc = _cdiv(batch, nc)          # per-core batch
    g = _cdiv(bc, tb_cap)          # grid steps per core
    tb = _cdiv(bc, g)              # block batch size (<= tb_cap by construction)
    return tb, g


def atplr_loss(s1: jax.Array, s2: jax.Array) -> jax.Array:
    """Pallas implementation of ATPLRLoss.forward(s1, s2) -> scalar."""
    assert s1.shape == s2.shape and s1.ndim == 3
    B, S, F = s1.shape
    w = jnp.asarray(make_plr_weights(S))                  # (K, S) static schedule
    K = int(w.shape[0])
    itemsize = jnp.dtype(s1.dtype).itemsize

    nc = 2                                                # always 2 -> megacore split on v7x
    vmem_limit = _vmem_limit_bytes()
    tb, g = _choose_tiling(B, S, F, itemsize, nc, budget_bytes=vmem_limit // 2)
    unroll = math.gcd(tb, 8)

    # zero-pad batch so the (nc, g) grid always covers it exactly; padded rows
    # give d == 0 and contribute 0 to the sum.
    B_pad = nc * g * tb
    if B_pad != B:
        pad = B_pad - B
        s1 = jnp.pad(s1, ((0, pad), (0, 0), (0, 0)))
        s2 = jnp.pad(s2, ((0, pad), (0, 0), (0, 0)))

    # mean over segments (dim=1) then mean over (batch, feat) == sum / (B*K*F)
    inv_count = 1.0 / float(B * K * F)

    kernel = functools.partial(_atplr_kernel, unroll=unroll)
    cost = pl.CostEstimate(
        flops=2 * B_pad * K * S * F + B_pad * S * F + 2 * B_pad * K * F,
        transcendentals=0,
        bytes_accessed=2 * B_pad * S * F * itemsize + K * S * 4 + nc * K * F * 4,
    )

    partials = pl.pallas_call(
        kernel,
        out_shape=jax.ShapeDtypeStruct((nc, K, F), jnp.float32),
        grid_spec=pltpu.PrefetchScalarGridSpec(
            num_scalar_prefetch=0,
            grid=(nc, g),
            in_specs=[
                pl.BlockSpec((K, S), lambda c, j: (0, 0)),                 # W, replicated
                pl.BlockSpec((tb, S, F), lambda c, j: (c * g + j, 0, 0)),  # s1 block
                pl.BlockSpec((tb, S, F), lambda c, j: (c * g + j, 0, 0)),  # s2 block
            ],
            out_specs=pl.BlockSpec((1, K, F), lambda c, j: (c, 0, 0)),     # per-core partial
            scratch_shapes=[pltpu.VMEM((K, F), jnp.float32)],              # accumulator
        ),
        compiler_params=pltpu.CompilerParams(
            dimension_semantics=("parallel", "arbitrary"),
            vmem_limit_bytes=int(vmem_limit),
        ),
        cost_estimate=cost,
    )(w, s1, s2)

    # tiny final reduction (nc*K*F elements) + scaling done in the wrapper
    return jnp.sum(partials) * inv_count


def atplr_loss_ref(s1: np.ndarray, s2: np.ndarray) -> float:
    """NumPy transliteration of the PyTorch reference (for validation)."""
    def plr(s):
        cs = np.cumsum(s, axis=1)
        seq = s.shape[1]
        max_w = seq // 2
        segs = []
        window, start = 1, 0
        while start < seq:
            end = min(start + window, seq)
            seg = (cs[:, end - 1] - cs[:, start - 1]) / (end - start + 1)
            segs.append(seg[:, None, :])
            start += window
            window *= 2
            if window > max_w:
                window = max_w
        return np.concatenate(segs, axis=1)
    diff = (plr(s1) - plr(s2)) ** 2
    return float(np.mean(np.mean(diff, axis=1)))


if __name__ == "__main__":
    key = jax.random.PRNGKey(0)
    k1, k2 = jax.random.split(key)
    B, S, F = 2, 8, 32
    s1 = jax.random.normal(k1, (B, S, F), dtype=jnp.float32)
    s2 = jax.random.normal(k2, (B, S, F), dtype=jnp.float32)

    out = jax.block_until_ready(atplr_loss(s1, s2))
    ref = atplr_loss_ref(np.asarray(s1), np.asarray(s2))
    assert np.allclose(float(out), ref, rtol=1e-4, atol=1e-5), (float(out), ref)
    print("KERNEL_OK")
</pallas_src>

<mosaic_0001>
module attributes {stable_mosaic.version = 11 : i64} {
  func.func @_atplr_kernel(%arg0: i32, %arg1: i32, %arg2: memref<4x8xf32, #tpu.memory_space<vmem>>, %arg3: memref<1x8x32xf32, #tpu.memory_space<vmem>>, %arg4: memref<1x8x32xf32, #tpu.memory_space<vmem>>, %arg5: memref<1x4x32xf32, #tpu.memory_space<vmem>>, %arg6: memref<4x32xf32, #tpu.memory_space<vmem>>) attributes {dimension_semantics = [#tpu.dimension_semantics<parallel>, #tpu.dimension_semantics<arbitrary>], iteration_bounds = array<i64: 2, 1>, scalar_prefetch = 0 : i64, scratch_operands = 1 : i64, tpu.core_type = #tpu.core_type<tc>, window_params = [{pipeline_mode = #tpu.pipeline_mode<synchronous>, transform_indices = @transform_0, window_bounds = array<i64: 4, 8>}, {transform_indices = @transform_1, window_bounds = array<i64: 1, 8, 32>}, {transform_indices = @transform_2, window_bounds = array<i64: 1, 8, 32>}, {transform_indices = @transform_3, window_bounds = array<i64: 1, 4, 32>}]} {
    %c0_i32 = arith.constant 0 : i32
    %0 = arith.cmpi eq, %arg1, %c0_i32 : i32
    %1 = arith.extui %0 : i1 to i32
    %c0_i32_0 = arith.constant 0 : i32
    %2 = arith.cmpi ne, %1, %c0_i32_0 : i32
    scf.if %2 {
      %cst_14 = arith.constant 0.000000e+00 : f32
      %21 = vector.broadcast %cst_14 : f32 to vector<4x32xf32>
      %c0_15 = arith.constant 0 : index
      %c0_16 = arith.constant 0 : index
      %22 = vector.load %arg6[%c0_15, %c0_16] : memref<4x32xf32, #tpu.memory_space<vmem>>, vector<4x32xf32>
      tpu.vector_store %arg6[%c0_15, %c0_16], %21 {strides = array<i32>} : memref<4x32xf32, #tpu.memory_space<vmem>>, vector<4x32xf32>,
    } else {
    }
    %c0 = arith.constant 0 : index
    %c0_1 = arith.constant 0 : index
    %3 = vector.load %arg2[%c0, %c0_1] : memref<4x8xf32, #tpu.memory_space<vmem>>, vector<4x8xf32>
    %cst = arith.constant 0.000000e+00 : f32
    %4 = vector.broadcast %cst : f32 to vector<4x32xf32>
    %c0_i32_2 = arith.constant 0 : i32
    %5 = arith.index_cast %c0_i32_2 : i32 to index
    %c0_3 = arith.constant 0 : index
    %c0_4 = arith.constant 0 : index
    %6 = vector.load %arg3[%5, %c0_3, %c0_4] : memref<1x8x32xf32, #tpu.memory_space<vmem>>, vector<1x8x32xf32>
    %7 = vector.shape_cast %6 : vector<1x8x32xf32> to vector<8x32xf32>
    %8 = arith.index_cast %c0_i32_2 : i32 to index
    %c0_5 = arith.constant 0 : index
    %c0_6 = arith.constant 0 : index
    %9 = vector.load %arg4[%8, %c0_5, %c0_6] : memref<1x8x32xf32, #tpu.memory_space<vmem>>, vector<1x8x32xf32>
    %10 = vector.shape_cast %9 : vector<1x8x32xf32> to vector<8x32xf32>
    %11 = arith.subf %7, %10 : vector<8x32xf32>
    %cst_7 = arith.constant dense<0.000000e+00> : vector<4x32xf32>
    %12 = tpu.matmul %3, %11, %cst_7 {dimension_numbers = #tpu.dot_dimension_numbers<[1], [0], [0], [1], [0, 0, 1, 1], [], []>} : vector<4x8xf32>, vector<8x32xf32>, vector<4x32xf32> -> vector<4x32xf32>
    %13 = arith.mulf %12, %12 : vector<4x32xf32>
    %14 = arith.addf %4, %13 : vector<4x32xf32>
    %c1_i32 = arith.constant 1 : i32
    %c0_8 = arith.constant 0 : index
    %c0_9 = arith.constant 0 : index
    %15 = vector.load %arg6[%c0_8, %c0_9] : memref<4x32xf32, #tpu.memory_space<vmem>>, vector<4x32xf32>
    %16 = arith.addf %15, %14 : vector<4x32xf32>
    %c0_10 = arith.constant 0 : index
    %c0_11 = arith.constant 0 : index
    %17 = vector.load %arg6[%c0_10, %c0_11] : memref<4x32xf32, #tpu.memory_space<vmem>>, vector<4x32xf32>
    tpu.vector_store %arg6[%c0_10, %c0_11], %16 {strides = array<i32>} : memref<4x32xf32, #tpu.memory_space<vmem>>, vector<4x32xf32>,
    %c0_i32_12 = arith.constant 0 : i32
    %18 = arith.cmpi eq, %arg1, %c0_i32_12 : i32
    %19 = arith.extui %18 : i1 to i32
    %c0_i32_13 = arith.constant 0 : i32
    %20 = arith.cmpi ne, %19, %c0_i32_13 : i32
    scf.if %20 {
      %c0_14 = arith.constant 0 : index
      %c0_15 = arith.constant 0 : index
      %21 = vector.load %arg6[%c0_14, %c0_15] : memref<4x32xf32, #tpu.memory_space<vmem>>, vector<4x32xf32>
      %22 = vector.shape_cast %21 : vector<4x32xf32> to vector<1x4x32xf32>
      %c0_16 = arith.constant 0 : index
      %c0_17 = arith.constant 0 : index
      %c0_18 = arith.constant 0 : index
      %23 = vector.load %arg5[%c0_16, %c0_17, %c0_18] : memref<1x4x32xf32, #tpu.memory_space<vmem>>, vector<1x4x32xf32>
      tpu.vector_store %arg5[%c0_16, %c0_17, %c0_18], %22 {strides = array<i32>} : memref<1x4x32xf32, #tpu.memory_space<vmem>>, vector<1x4x32xf32>,
    } else {
    }
    return
  }
  func.func @transform_0(%arg0: i32, %arg1: i32) -> (i32, i32) {
    %c0_i32 = arith.constant 0 : i32
    %c0_i32_0 = arith.constant 0 : i32
    %c0_i32_1 = arith.constant 0 : i32
    return %c0_i32, %c0_i32_0 : i32, i32
  }
  func.func @transform_1(%arg0: i32, %arg1: i32) -> (i32, i32, i32) {
    %c1_i32 = arith.constant 1 : i32
    %0 = arith.muli %arg0, %c1_i32 : i32
    %1 = arith.addi %0, %arg1 : i32
    %c0_i32 = arith.constant 0 : i32
    %c0_i32_0 = arith.constant 0 : i32
    %c0_i32_1 = arith.constant 0 : i32
    return %1, %c0_i32, %c0_i32_0 : i32, i32, i32
  }
  func.func @transform_2(%arg0: i32, %arg1: i32) -> (i32, i32, i32) {
    %c1_i32 = arith.constant 1 : i32
    %0 = arith.muli %arg0, %c1_i32 : i32
    %1 = arith.addi %0, %arg1 : i32
    %c0_i32 = arith.constant 0 : i32
    %c0_i32_0 = arith.constant 0 : i32
    %c0_i32_1 = arith.constant 0 : i32
    return %1, %c0_i32, %c0_i32_0 : i32, i32, i32
  }
  func.func @transform_3(%arg0: i32, %arg1: i32) -> (i32, i32, i32) {
    %c0_i32 = arith.constant 0 : i32
    %c0_i32_0 = arith.constant 0 : i32
    %c0_i32_1 = arith.constant 0 : i32
    return %arg0, %c0_i32, %c0_i32_0 : i32, i32, i32
  }
}

</mosaic_0001>

<llo_original>
// kernel: tpu_custom_call.1
$region0: #{tpu_custom_call.1}
  #allocation0 [shape = 'u32[]', space=smem, size = 0x4, offset = 0x4, fixed_abs, tag = 'smem constant byte address 0x4 - core index']
  #allocation1 [shape = 'u32[72,128]{1,0:T(1,128)}', space=vmem, size = 0x9000, scoped, tag = 'internal scratch']
  #allocation2 [shape = 'f32[4,32]{1,0:T(4,128)}', space=vmem, size = 0x800, scoped, tag = 'scratch operand']
  %s0 = inlined_call_operand.hbm [shape: f32[4,8], index: 0, kind: input, shape index: {}]
  %s1 = inlined_call_operand.hbm [shape: f32[2,8,32], index: 1, kind: input, shape index: {}]
  %s2 = inlined_call_operand.hbm [shape: f32[2,8,32], index: 2, kind: input, shape index: {}]
  %s3 = inlined_call_operand.hbm [shape: f32[2,4,32], index: 3, kind: output, shape index: {}]
  %s4 = sld [smem:[#allocation0]]
  $region65: #{tpu_custom_call.1} parent=0
    _
  %s6 = ssub.s32 1, %s4
  %s7 = scalar_select 0, %s6, %s4
  $region1: #{tpu_custom_call.1} parent=0
    #allocation3 [shape = 'u8[2048]{0}', space=vmem, size = 0x800, scoped, tag = 'input window, operand 0, single buffered']
    #allocation4 [shape = 's32[2]{0}', space=sflag, size = 0x8, scoped, tag = 'scoped memory for tpu_custom_call.1']
    #allocation5 [shape = 's32[2]{0}', space=sflag, size = 0x8, scoped, tag = 'scoped memory for tpu_custom_call.1']
    #allocation6 [shape = 'u8[8192]{0}', space=vmem, size = 0x2000, scoped, tag = 'input window, operand 1']
    #allocation7 [shape = 's32[2]{0}', space=sflag, size = 0x8, scoped, tag = 'scoped memory for tpu_custom_call.1']
    #allocation8 [shape = 'u8[8192]{0}', space=vmem, size = 0x2000, scoped, tag = 'input window, operand 2']
    #allocation9 [shape = 'u8[4096]{0}', space=vmem, size = 0x1000, scoped, tag = 'output window, operand 0']
    %8 = vsyncpa [#allocation4], 0
    %9 = vsyncpa [#allocation7], 0
    %s10 = scalar_lea.sflag [#allocation7], 1
    %11 = vsyncpa %s10, 0
    %12 = vsyncpa [#allocation5], 0
    %s13 = scalar_lea.sflag [#allocation5], 1
    %14 = vsyncpa %s13, 0
    loop: start=0, step=1, limit=4
    $region2: #{tpu_custom_call.1} parent=1 // loop_pre_header
      _
    $region3: #{tpu_custom_call.1} parent=1 // loop_header
      %s16 = sphi 0, %s20
      %p17 = scmp.ge.s32.totalorder %s16, 4
      %s23 = sphi 0, %s35
      %s24 = sphi 0, %s31
      %s25 = sphi 0, %s23
      %s26 = sphi 0, %s24
      %s27 = sphi 0, %s25
      %s28 = sphi 0, %s26
      %s36 = sphi 0, %s36
      %s38 = sphi 0, %s36
      %s39 = sphi 0, %s38
      %s53 = sphi 0, %s39
      %s61 = sphi 0, %s63
      %s64 = sphi 0, %s61
      %s65 = sphi 0, %s64
      %s81 = sphi 0, %s65
      %s89 = sphi 0, %s91
      %s92 = sphi 0, %s89
      %s93 = sphi 0, %s92
      %s109 = sphi 0, %s93
      %s115 = sphi 0, %s117
      %s118 = sphi 0, %s115
      %s119 = sphi 0, %s118
      %s135 = sphi 0, %s119
    $region4: #{tpu_custom_call.1} parent=1 // loop_header_branch
      %19 = sbr.rel (%p17) target = $region8
    $region5: #{tpu_custom_call.1} parent=1 // loop_body
      %s21 = ssub.s32 %s16, 1
      %s22 = ssub.s32 %s16, 2
      %s29 = sadd.s32 1, %s24
      %p30 = scmp.ge.s32.totalorder %s29, 1
      %s31 = scalar_select %p30, 0, %s29
      %s32 = sadd.s32 1, %s23
      %s33 = scalar_select %p30, %s32, %s23
      %p34 = scmp.ge.s32.totalorder %s33, 2
      %s35 = scalar_select %p34, 0, %s33
      %s37 = sadd.s32 %s36, 1
      %p40 = scmp.eq.s32.totalorder %s16, 1
      %p41 = scmp.ne.s32.totalorder %s36, %s38
      %p42 = scmp.eq.s32.totalorder %s16, 0
      %p43 = por %p41, %p42
      %p44 = scmp.ne.s32.totalorder %s36, %s38
      %p45 = scmp.eq.s32.totalorder %s21, 1
      %p46 = por %p44, %p45
      %p47 = scmp.ne.s32.totalorder %s38, %s39
      %p48 = scmp.eq.s32.totalorder %s21, 0
      %p49 = por %p47, %p48
      %p50 = scmp.ne.s32.totalorder %s38, %s39
      %p51 = scmp.eq.s32.totalorder %s22, 1
      %p52 = por %p50, %p51
      %p54 = scmp.ne.s32.totalorder %s39, %s53
      %p55 = scmp.eq.s32.totalorder %s22, 0
      %p56 = por %p54, %p55
      %s57 = sadd.s32 %s23, %s24
      %s58 = sadd.s32 %s35, %s31
      %s59 = ssub.s32 %s57, %s58
      %p60 = scmp.eq.s32.totalorder %s59, 0
      %s62 = sadd.s32 %s61, 1
      %s63 = scalar_select %p60, %s61, %s62
      %p66 = pneg %p60
      %p67 = scmp.eq.s32.totalorder %s16, 1
      %p68 = por %p66, %p67
      %p69 = scmp.ne.s32.totalorder %s61, %s64
      %p70 = scmp.eq.s32.totalorder %s16, 0
      %p71 = por %p69, %p70
      %p72 = scmp.ne.s32.totalorder %s61, %s64
      %p73 = scmp.eq.s32.totalorder %s21, 1
      %p74 = por %p72, %p73
      %p75 = scmp.ne.s32.totalorder %s64, %s65
      %p76 = scmp.eq.s32.totalorder %s21, 0
      %p77 = por %p75, %p76
      %p78 = scmp.ne.s32.totalorder %s64, %s65
      %p79 = scmp.eq.s32.totalorder %s22, 1
      %p80 = por %p78, %p79
      %p82 = scmp.ne.s32.totalorder %s65, %s81
      %p83 = scmp.eq.s32.totalorder %s22, 0
      %p84 = por %p82, %p83
      %s85 = sadd.s32 %s23, %s24
      %s86 = sadd.s32 %s35, %s31
      %s87 = ssub.s32 %s85, %s86
      %p88 = scmp.eq.s32.totalorder %s87, 0
      %s90 = sadd.s32 %s89, 1
      %s91 = scalar_select %p88, %s89, %s90
      %p94 = pneg %p88
      %p95 = scmp.eq.s32.totalorder %s16, 1
      %p96 = por %p94, %p95
      %p97 = scmp.ne.s32.totalorder %s89, %s92
      %p98 = scmp.eq.s32.totalorder %s16, 0
      %p99 = por %p97, %p98
      %p100 = scmp.ne.s32.totalorder %s89, %s92
      %p101 = scmp.eq.s32.totalorder %s21, 1
      %p102 = por %p100, %p101
      %p103 = scmp.ne.s32.totalorder %s92, %s93
      %p104 = scmp.eq.s32.totalorder %s21, 0
      %p105 = por %p103, %p104
      %p106 = scmp.ne.s32.totalorder %s92, %s93
      %p107 = scmp.eq.s32.totalorder %s22, 1
      %p108 = por %p106, %p107
      %p110 = scmp.ne.s32.totalorder %s93, %s109
      %p111 = scmp.eq.s32.totalorder %s22, 0
      %p112 = por %p110, %p111
      %s113 = ssub.s32 %s23, %s35
      %p114 = scmp.eq.s32.totalorder %s113, 0
      %s116 = sadd.s32 %s115, 1
      %s117 = scalar_select %p114, %s115, %s116
      %p120 = pneg %p114
      %p121 = scmp.eq.s32.totalorder %s16, 1
      %p122 = por %p120, %p121
      %p123 = scmp.ne.s32.totalorder %s115, %s118
      %p124 = scmp.eq.s32.totalorder %s16, 0
      %p125 = por %p123, %p124
      %p126 = scmp.ne.s32.totalorder %s115, %s118
      %p127 = scmp.eq.s32.totalorder %s21, 1
      %p128 = por %p126, %p127
      %p129 = scmp.ne.s32.totalorder %s118, %s119
      %p130 = scmp.eq.s32.totalorder %s21, 0
      %p131 = por %p129, %p130
      %p132 = scmp.ne.s32.totalorder %s118, %s119
      %p133 = scmp.eq.s32.totalorder %s22, 1
      %p134 = por %p132, %p133
      %p136 = scmp.ne.s32.totalorder %s119, %s135
      %p137 = scmp.eq.s32.totalorder %s22, 0
      %p138 = por %p136, %p137
      %p139 = scmp.le.s32.totalorder 1, %s16
      %p140 = scmp.lt.s32.totalorder %s16, 3
      %p141 = pnand %p139, %p140
      %p142 = pneg %p141
      // Predicated region
      $region9: #{tpu_custom_call.1} parent=5 // pred_check
        _
      $region10: #{tpu_custom_call.1} parent=5 // pred_check_branch
        %144 = sbr.rel (%p141) target = $region12
      $region11: #{tpu_custom_call.1} parent=5 // pred_region
        %s145 = ssub.s32 %s16, 1
        // Predicated region
        $region13: #{tpu_custom_call.1} parent=11 // pred_check
          %p146 = pneg %p49
        $region14: #{tpu_custom_call.1} parent=11 // pred_check_branch
          %148 = sbr.rel (%p146) target = $region16
        $region15: #{tpu_custom_call.1} parent=11 // pred_region
          %150 = vsyncadd [#allocation4], 0
          %s152 = sshll.u32 %s0, 4
          %s153 = int_to_ptr.hbm [resolvable:$true] %s152
          %s154 = sshll.u32 [#allocation3], 4
          %s155 = int_to_ptr.vmem [resolvable:$true] %s154
          %157 = dma.hbm_to_vmem [thread:$0]  %s153, 64, %s155, [#allocation4]
        $region16: #{tpu_custom_call.1} parent=11 // pred_fallthru
          _
      $region12: #{tpu_custom_call.1} parent=5 // pred_fallthru
        _
      %p158 = scmp.lt.s32.totalorder %s16, 2
      // Predicated region
      $region17: #{tpu_custom_call.1} parent=5 // pred_check
        %p159 = pneg %p158
      $region18: #{tpu_custom_call.1} parent=5 // pred_check_branch
        %161 = sbr.rel (%p159) target = $region20
      $region19: #{tpu_custom_call.1} parent=5 // pred_region
        // Predicated region
        $region21: #{tpu_custom_call.1} parent=19 // pred_check
          %p162 = pneg %p71
        $region22: #{tpu_custom_call.1} parent=19 // pred_check_branch
          %164 = sbr.rel (%p162) target = $region24
        $region23: #{tpu_custom_call.1} parent=19 // pred_region
          %s165 = sand.u32 %s16, 1
          %s166 = scalar_lea.sflag [#allocation7], %s165
          %s167 = sand.u32 %s61, 1
          %s168 = smul.addr %s167, 8
          %s169 = scalar_lea.vmem [#allocation6], %s168
          %s170 = sadd.s32 %s23, %s24
          %172 = vsyncadd %s166, 0
          %s173 = smul.addr %s170, 8
          %s174 = scalar_lea.hbm %s1, %s173
          %s176 = sshll.u32 %s174, 4
          %s177 = int_to_ptr.hbm [resolvable:$true] %s176
          %s178 = sshll.u32 %s169, 4
          %s179 = int_to_ptr.vmem [resolvable:$true] %s178
          %181 = dma.hbm_to_vmem [thread:$0]  %s177, 128, %s179, %s166
        $region24: #{tpu_custom_call.1} parent=19 // pred_fallthru
          _
        // Predicated region
        $region25: #{tpu_custom_call.1} parent=19 // pred_check
          %p182 = pneg %p99
        $region26: #{tpu_custom_call.1} parent=19 // pred_check_branch
          %184 = sbr.rel (%p182) target = $region28
        $region27: #{tpu_custom_call.1} parent=19 // pred_region
          %s185 = sand.u32 %s16, 1
          %s186 = scalar_lea.sflag [#allocation7], %s185
          %s187 = sand.u32 %s89, 1
          %s188 = smul.addr %s187, 8
          %s189 = scalar_lea.vmem [#allocation8], %s188
          %s190 = sadd.s32 %s23, %s24
          %192 = vsyncadd %s186, 0
          %s193 = smul.addr %s190, 8
          %s194 = scalar_lea.hbm %s2, %s193
          %s196 = sshll.u32 %s194, 4
          %s197 = int_to_ptr.hbm [resolvable:$true] %s196
          %s198 = sshll.u32 %s189, 4
          %s199 = int_to_ptr.vmem [resolvable:$true] %s198
          %201 = dma.hbm_to_vmem [thread:$0]  %s197, 128, %s199, %s186
        $region28: #{tpu_custom_call.1} parent=19 // pred_fallthru
          _
      $region20: #{tpu_custom_call.1} parent=5 // pred_fallthru
        _
      %p202 = scmp.le.s32.totalorder 1, %s16
      %p203 = scmp.lt.s32.totalorder %s16, 3
      %p204 = pnand %p202, %p203
      %p205 = pneg %p204
      // Predicated region
      $region29: #{tpu_custom_call.1} parent=5 // pred_check
        _
      $region30: #{tpu_custom_call.1} parent=5 // pred_check_branch
        %207 = sbr.rel (%p204) target = $region32
      $region31: #{tpu_custom_call.1} parent=5 // pred_region
        %s208 = ssub.s32 %s16, 1
        // Predicated region
        $region33: #{tpu_custom_call.1} parent=31 // pred_check
          %p209 = pneg %p49
        $region34: #{tpu_custom_call.1} parent=31 // pred_check_branch
          %211 = sbr.rel (%p209) target = $region36
        $region35: #{tpu_custom_call.1} parent=31 // pred_region
          %213 = dma.done [#allocation4], 64
        $region36: #{tpu_custom_call.1} parent=31 // pred_fallthru
          _
        %s214 = sand.u32 %s21, 1
        %s215 = scalar_lea.sflag [#allocation7], %s214
        %s216 = sand.u32 %s64, 1
        %s217 = smul.addr %s216, 8
        %s218 = scalar_lea.vmem [#allocation6], %s217
        // Predicated region
        $region37: #{tpu_custom_call.1} parent=31 // pred_check
          %p219 = pneg %p77
        $region38: #{tpu_custom_call.1} parent=31 // pred_check_branch
          %221 = sbr.rel (%p219) target = $region40
        $region39: #{tpu_custom_call.1} parent=31 // pred_region
          %223 = dma.done %s215, 128
        $region40: #{tpu_custom_call.1} parent=31 // pred_fallthru
          _
        %s224 = sand.u32 %s21, 1
        %s225 = scalar_lea.sflag [#allocation7], %s224
        %s226 = sand.u32 %s92, 1
        %s227 = smul.addr %s226, 8
        %s228 = scalar_lea.vmem [#allocation8], %s227
        // Predicated region
        $region41: #{tpu_custom_call.1} parent=31 // pred_check
          %p229 = pneg %p105
        $region42: #{tpu_custom_call.1} parent=31 // pred_check_branch
          %231 = sbr.rel (%p229) target = $region44
        $region43: #{tpu_custom_call.1} parent=31 // pred_region
          %233 = dma.done %s225, 128
        $region44: #{tpu_custom_call.1} parent=31 // pred_fallthru
          _
        %p234 = pneg %p49
        %p235 = pneg %p46
        %s236 = sand.u32 %s21, 1
        %s237 = scalar_lea.sflag [#allocation7], %s236
        %s238 = sand.u32 %s64, 1
        %s239 = smul.addr %s238, 8
        %s240 = scalar_lea.vmem [#allocation6], %s239
        %p241 = pneg %p77
        %p242 = pneg %p74
        %s243 = sand.u32 %s21, 1
        %s244 = scalar_lea.sflag [#allocation7], %s243
        %s245 = sand.u32 %s92, 1
        %s246 = smul.addr %s245, 8
        %s247 = scalar_lea.vmem [#allocation8], %s246
        %p248 = pneg %p105
        %p249 = pneg %p102
        %p250 = pneg %p131
        %p251 = pneg %p128
        %s252 = sand.u32 %s118, 1
        %s253 = scalar_lea.sflag [#allocation5], %s252
        %s254 = sand.u32 %s118, 1
        %s255 = smul.addr %s254, 4
        %s256 = scalar_lea.vmem [#allocation9], %s255
        %s257 = sadd.s32 %s25, %s26
        %s258 = sadd.s32 %s25, %s26
        %p259 = scmp.eq.s32.totalorder %s26, 0
        // Predicated region
        $region45: #{tpu_custom_call.1} parent=31 // pred_check
          %p260 = pneg %p259
        $region46: #{tpu_custom_call.1} parent=31 // pred_check_branch
          %262 = sbr.rel (%p260) target = $region48
        $region47: #{tpu_custom_call.1} parent=31 // pred_region
          %vm263 = vcmask 257024
          %264 = vst.msk [vmem:[#allocation2] sm:$0xf] %vm263, 0.0
        $region48: #{tpu_custom_call.1} parent=31 // pred_fallthru
          _
        %v265 = vld [vmem:[#allocation3] sm:$0xf]
        %v266 = vld [vmem:[%s218] sm:$0xff]
        %v267 = vld [vmem:[%s228] sm:$0xff]
        %v268 = vsub.f32 %v266, %v267
        %vm269 = vcmask 64512
        %v271 = vsel %vm269, %v265, 0
        %273 = vmatpush.msra.mxu0 0.0
        %274 = vmatpush.msra.mxu0 0.0
        %275 = vmatpush.msra.mxu0 0.0
        %276 = vmatpush.msra.mxu0 0.0
        %277 = vmatpush.msra.mxu0 0.0
        %278 = vmatpush.msra.mxu0 0.0
        %279 = vmatpush.msra.mxu0 0.0
        %280 = vmatpush.msra.mxu0 0.0
        %281 = vmatpush.msra.mxu0 0.0
        %282 = vmatpush.msra.mxu0 0.0
        %283 = vmatpush.msra.mxu0 0.0
        %284 = vmatpush.msra.mxu0 0.0
        %285 = vmatpush.msra.mxu0 0.0
        %286 = vmatpush.msra.mxu0 0.0
        %287 = vmatpush.msra.mxu0 0.0
        %288 = vmatpush.msra.mxu0 %v268
        %289 = vmatmul.f32.gmra.mxu0 %v271
        %v290 = vpop.f32.mrf.mxu0
        %v291 = vadd.f32 0.0, %v290
        %292 = vdwg.mxu0
        %v293 = vmul.f32 %v291, %v291
        %v294 = vadd.f32 %v293, 0.0
        %v295 = vld [vmem:[#allocation2] sm:$0xf]
        %v296 = vadd.f32 %v295, %v294
        %vm297 = vcmask 257024
        %298 = vst.msk [vmem:[#allocation2] sm:$0xf] %vm297, %v296
        // Predicated region
        $region49: #{tpu_custom_call.1} parent=31 // pred_check
          %p299 = pneg %p259
        $region50: #{tpu_custom_call.1} parent=31 // pred_check_branch
          %301 = sbr.rel (%p299) target = $region52
        $region51: #{tpu_custom_call.1} parent=31 // pred_region
          %v302 = vld [vmem:[#allocation2] sm:$0xf]
          %303 = vst.msk [vmem:[%s256] sm:$0xf] %vm297, %v302
        $region52: #{tpu_custom_call.1} parent=31 // pred_fallthru
          _
        %s304 = sand.u32 %s118, 1
        %s305 = scalar_lea.sflag [#allocation5], %s304
        %s306 = sand.u32 %s118, 1
        %s307 = smul.addr %s306, 4
        %s308 = scalar_lea.vmem [#allocation9], %s307
        // Predicated region
        $region53: #{tpu_custom_call.1} parent=31 // pred_check
          %p309 = pneg %p128
        $region54: #{tpu_custom_call.1} parent=31 // pred_check_branch
          %311 = sbr.rel (%p309) target = $region56
        $region55: #{tpu_custom_call.1} parent=31 // pred_region
          %313 = vsyncadd %s305, 0
          %s314 = smul.addr %s25, 4
          %s315 = scalar_lea.hbm %s3, %s314
          %s317 = sshll.u32 %s308, 4
          %s318 = int_to_ptr.vmem [resolvable:$true] %s317
          %s319 = sshll.u32 %s315, 4
          %s320 = int_to_ptr.hbm [resolvable:$true] %s319
          %322 = dma.vmem_to_hbm [thread:$0]  %s318, 64, %s320, %s305
        $region56: #{tpu_custom_call.1} parent=31 // pred_fallthru
          _
      $region32: #{tpu_custom_call.1} parent=5 // pred_fallthru
        _
      %p323 = scmp.le.s32.totalorder 2, %s16
      // Predicated region
      $region57: #{tpu_custom_call.1} parent=5 // pred_check
        %p324 = pneg %p323
      $region58: #{tpu_custom_call.1} parent=5 // pred_check_branch
        %326 = sbr.rel (%p324) target = $region60
      $region59: #{tpu_custom_call.1} parent=5 // pred_region
        %s327 = ssub.s32 %s16, 2
        // Predicated region
        $region61: #{tpu_custom_call.1} parent=59 // pred_check
          %p328 = pneg %p134
        $region62: #{tpu_custom_call.1} parent=59 // pred_check_branch
          %330 = sbr.rel (%p328) target = $region64
        $region63: #{tpu_custom_call.1} parent=59 // pred_region
          %s331 = sand.u32 %s119, 1
          %s332 = scalar_lea.sflag [#allocation5], %s331
          %s333 = sand.u32 %s119, 1
          %s334 = smul.addr %s333, 4
          %s335 = scalar_lea.vmem [#allocation9], %s334
          %337 = dma.done %s332, 64
        $region64: #{tpu_custom_call.1} parent=59 // pred_fallthru
          _
      $region60: #{tpu_custom_call.1} parent=5 // pred_fallthru
        _
    $region6: #{tpu_custom_call.1} parent=1 // loop_footer
      %s20 = sadd.s32 1, %s16
    $region7: #{tpu_custom_call.1} parent=1 // loop_footer_branch
      %15 = sbr.rel target = $region3
    $region8: #{tpu_custom_call.1} parent=1 // loop_exit
      _
    %338 = vsyncpa [#allocation4], 1
    %s339 = scalar_lea.sflag [#allocation4], 1
    %340 = vsyncpa %s339, 1
    %341 = vsyncpa [#allocation7], 1
    %s342 = scalar_lea.sflag [#allocation7], 1
    %343 = vsyncpa %s342, 1
    %344 = vsyncpa [#allocation5], 1
    %s345 = scalar_lea.sflag [#allocation5], 1
    %346 = vsyncpa %s345, 1

</llo_original>
